<compile_context>
chip_gen: v5e
topology: v5e:2x2
jax: 0.10.0
libtpu: 0.0.40
codegen_flags: <defaults>
</compile_context>

<pallas_src>
import jax
import jax.numpy as jnp
from jax.experimental import pallas as pl
from jax.experimental.pallas import tpu as pltpu

_EPS = 1e-07
_NEG_FILL = -1e9   # exp(-1e9) underflows to exactly 0.0 in f32
_LANES = 128


def _cox_loss_kernel(pred_ref, cens_ref, out_ref, carry_ref, lik_ref, cnt_ref):
    """One grid step = one (R, 128) row-major slab of the sorted sequence.

    carry_ref : (1,1) f32 VMEM -- running sum of exp(pred) over previous slabs
    lik_ref   : (1,1) f32 VMEM -- running sum of censored-likelihood terms
    cnt_ref   : (1,1) f32 VMEM -- running sum of censored (event count)
    """
    i = pl.program_id(0)

    @pl.when(i == 0)
    def _init():
        carry_ref[...] = jnp.zeros_like(carry_ref)
        lik_ref[...] = jnp.zeros_like(lik_ref)
        cnt_ref[...] = jnp.zeros_like(cnt_ref)

    pred = pred_ref[...]                      # (R, 128)
    cens = cens_ref[...]                      # (R, 128)
    rows, lanes = pred.shape

    # risk = exp(pred); no max-shift so numerics match the PyTorch reference.
    risk = jnp.exp(pred)

    # ---- in-slab inclusive prefix sum (row-major order), 2 small matmuls ----
    # 1) within-row inclusive prefix: risk @ inclusive-upper-tri(128,128).
    kk = jax.lax.broadcasted_iota(jnp.int32, (lanes, lanes), 0)
    cc = jax.lax.broadcasted_iota(jnp.int32, (lanes, lanes), 1)
    tri_incl = (kk <= cc).astype(jnp.float32)                    # (128,128)
    lane_pref = jnp.dot(risk, tri_incl,
                        preferred_element_type=jnp.float32)      # (R,128)

    # 2) totals of all previous rows: strict-lower-tri(R,R) @ risk, lane-reduce.
    rr = jax.lax.broadcasted_iota(jnp.int32, (rows, rows), 0)
    pp = jax.lax.broadcasted_iota(jnp.int32, (rows, rows), 1)
    tri_strict = (rr > pp).astype(jnp.float32)                   # (R,R)
    prev_rows = jnp.dot(tri_strict, risk,
                        preferred_element_type=jnp.float32)      # (R,128)
    row_excl = jnp.sum(prev_rows, axis=1, keepdims=True)         # (R,1)

    # Global cumulative risk for every element of this slab.
    cum = lane_pref + row_excl + carry_ref[...]                   # (R,128)

    log_risk = jnp.log(cum + _EPS)
    lik = (pred - log_risk) * cens           # censored-likelihood terms

    # Fused partial reductions: lane reduce, then sublane reduce -> (1,1).
    lik_ref[...] += jnp.sum(jnp.sum(lik, axis=1, keepdims=True),
                            axis=0, keepdims=True)
    cnt_ref[...] += jnp.sum(jnp.sum(cens, axis=1, keepdims=True),
                            axis=0, keepdims=True)

    # Carry the cumulative risk forward to the next slab.
    row_tot = jnp.sum(risk, axis=1, keepdims=True)                # (R,1)
    carry_ref[...] += jnp.sum(row_tot, axis=0, keepdims=True)     # (1,1)

    @pl.when(i == pl.num_programs(0) - 1)
    def _finalize():
        out_ref[...] = -lik_ref[...] / (cnt_ref[...] + _EPS)


def cox_loss(predictions, event_times, censored, *, block_rows=8):
    """Exact equivalent of CoxLoss.forward for 1-D inputs of length N."""
    if block_rows % 8:
        raise ValueError("block_rows must be a multiple of 8")
    # TODO(synk): the data-dependent sort/gather has no clean in-kernel Pallas
    # equivalent; it stays in JAX glue.
    order = jnp.argsort(-event_times)
    pred_sorted = predictions[order].astype(jnp.float32)
    cens_sorted = censored[order].astype(jnp.float32)

    n = pred_sorted.shape[0]
    tile = block_rows * _LANES
    n_pad = pl.cdiv(n, tile) * tile
    pad = n_pad - n
    n_rows = n_pad // _LANES

    # Pad lanes: exp(_NEG_FILL) == 0 -> no cumsum contribution; cens == 0 ->
    # no contribution to either reduction.
    pred_p = jnp.pad(pred_sorted, (0, pad),
                     constant_values=_NEG_FILL).reshape(n_rows, _LANES)
    cens_p = jnp.pad(cens_sorted, (0, pad),
                     constant_values=0.0).reshape(n_rows, _LANES)

    out = pl.pallas_call(
        _cox_loss_kernel,
        out_shape=jax.ShapeDtypeStruct((1, 1), jnp.float32),
        grid=(n_rows // block_rows,),
        in_specs=[
            pl.BlockSpec((block_rows, _LANES), lambda i: (i, 0)),
            pl.BlockSpec((block_rows, _LANES), lambda i: (i, 0)),
        ],
        out_specs=pl.BlockSpec((1, 1), lambda i: (0, 0)),
        scratch_shapes=[
            pltpu.VMEM((1, 1), jnp.float32),   # running cumulative risk carry
            pltpu.VMEM((1, 1), jnp.float32),   # sum(censored_likelihood)
            pltpu.VMEM((1, 1), jnp.float32),   # sum(censored)
        ],
        compiler_params=pltpu.CompilerParams(
            dimension_semantics=("arbitrary",)),   # sequential scan w/ carry
    )(pred_p, cens_p)
    return out[0, 0]


def cox_loss_ref(predictions, event_times, censored):
    """Pure-JAX reference mirroring the PyTorch forward (for sanity check)."""
    eps = 1e-07
    order = jnp.argsort(-event_times)
    pred = predictions[order]
    cens = censored[order]
    risk = jnp.exp(pred)
    cum = jnp.cumsum(risk, axis=0)
    log_risk = jnp.log(cum + eps)
    uncensored = pred - log_risk
    censored_lik = uncensored * cens
    neg = -jnp.sum(censored_lik)
    num_events = jnp.sum(cens)
    return neg / (num_events + eps)


if __name__ == "__main__":
    # --- small case: batch of 8 patients (single grid step) ---
    k1, k2, k3 = jax.random.split(jax.random.PRNGKey(0), 3)
    N = 8
    predictions = jax.random.normal(k1, (N,), dtype=jnp.float32)
    event_times = jax.random.uniform(k2, (N,), dtype=jnp.float32) * 100.0
    censored = (jax.random.uniform(k3, (N,)) > 0.3).astype(jnp.float32)

    loss = jax.block_until_ready(cox_loss(predictions, event_times, censored))
    ref = jax.block_until_ready(cox_loss_ref(predictions, event_times, censored))
    assert jnp.allclose(loss, ref, atol=1e-5, rtol=1e-5), (loss, ref)

    # --- multi-tile case (grid = 3): exercises the carry / accumulator path ---
    k4, k5, k6 = jax.random.split(jax.random.PRNGKey(1), 3)
    N2 = 2500
    predictions2 = jax.random.normal(k4, (N2,), dtype=jnp.float32)
    event_times2 = jax.random.uniform(k5, (N2,), dtype=jnp.float32) * 100.0
    censored2 = (jax.random.uniform(k6, (N2,)) > 0.3).astype(jnp.float32)

    loss2 = jax.block_until_ready(cox_loss(predictions2, event_times2, censored2))
    ref2 = jax.block_until_ready(cox_loss_ref(predictions2, event_times2, censored2))
    assert jnp.allclose(loss2, ref2, atol=1e-4, rtol=1e-4), (loss2, ref2)

    print("KERNEL_OK")
</pallas_src>

<mosaic_0001>
module attributes {stable_mosaic.version = 11 : i64} {
  func.func @_cox_loss_kernel(%arg0: i32, %arg1: memref<8x128xf32, #tpu.memory_space<vmem>>, %arg2: memref<8x128xf32, #tpu.memory_space<vmem>>, %arg3: memref<1x1xf32, #tpu.memory_space<vmem>>, %arg4: memref<1x1xf32, #tpu.memory_space<vmem>>, %arg5: memref<1x1xf32, #tpu.memory_space<vmem>>, %arg6: memref<1x1xf32, #tpu.memory_space<vmem>>) attributes {dimension_semantics = [#tpu.dimension_semantics<arbitrary>], iteration_bounds = array<i64: 1>, scalar_prefetch = 0 : i64, scratch_operands = 3 : i64, tpu.core_type = #tpu.core_type<tc>, window_params = [{transform_indices = @transform_0, window_bounds = array<i64: 8, 128>}, {transform_indices = @transform_1, window_bounds = array<i64: 8, 128>}, {pipeline_mode = #tpu.pipeline_mode<synchronous>, transform_indices = @transform_2, window_bounds = array<i64: 1, 1>}]} {
    %c0_i32 = arith.constant 0 : i32
    %0 = arith.cmpi eq, %arg0, %c0_i32 : i32
    %1 = arith.extui %0 : i1 to i32
    %c0_i32_0 = arith.constant 0 : i32
    %2 = arith.cmpi ne, %1, %c0_i32_0 : i32
    scf.if %2 {
      %cst_29 = arith.constant 0.000000e+00 : f32
      %54 = vector.broadcast %cst_29 : f32 to vector<1x1xf32>
      %c0_30 = arith.constant 0 : index
      %c0_31 = arith.constant 0 : index
      %55 = vector.load %arg4[%c0_30, %c0_31] : memref<1x1xf32, #tpu.memory_space<vmem>>, vector<1x1xf32>
      tpu.vector_store %arg4[%c0_30, %c0_31], %54 {strides = array<i32>} : memref<1x1xf32, #tpu.memory_space<vmem>>, vector<1x1xf32>,
      %cst_32 = arith.constant 0.000000e+00 : f32
      %56 = vector.broadcast %cst_32 : f32 to vector<1x1xf32>
      %c0_33 = arith.constant 0 : index
      %c0_34 = arith.constant 0 : index
      %57 = vector.load %arg5[%c0_33, %c0_34] : memref<1x1xf32, #tpu.memory_space<vmem>>, vector<1x1xf32>
      tpu.vector_store %arg5[%c0_33, %c0_34], %56 {strides = array<i32>} : memref<1x1xf32, #tpu.memory_space<vmem>>, vector<1x1xf32>,
      %cst_35 = arith.constant 0.000000e+00 : f32
      %58 = vector.broadcast %cst_35 : f32 to vector<1x1xf32>
      %c0_36 = arith.constant 0 : index
      %c0_37 = arith.constant 0 : index
      %59 = vector.load %arg6[%c0_36, %c0_37] : memref<1x1xf32, #tpu.memory_space<vmem>>, vector<1x1xf32>
      tpu.vector_store %arg6[%c0_36, %c0_37], %58 {strides = array<i32>} : memref<1x1xf32, #tpu.memory_space<vmem>>, vector<1x1xf32>,
    } else {
    }
    %c0 = arith.constant 0 : index
    %c0_1 = arith.constant 0 : index
    %3 = vector.load %arg1[%c0, %c0_1] : memref<8x128xf32, #tpu.memory_space<vmem>>, vector<8x128xf32>
    %c0_2 = arith.constant 0 : index
    %c0_3 = arith.constant 0 : index
    %4 = vector.load %arg2[%c0_2, %c0_3] : memref<8x128xf32, #tpu.memory_space<vmem>>, vector<8x128xf32>
    %5 = math.exp %3 : vector<8x128xf32>
    %6 = tpu.iota {dimensions = array<i32: 0>} : vector<128x128xi32>
    %7 = tpu.iota {dimensions = array<i32: 1>} : vector<128x128xi32>
    %8 = arith.cmpi sle, %6, %7 : vector<128x128xi32>
    %9 = arith.extui %8 : vector<128x128xi1> to vector<128x128xi32>
    %10 = arith.sitofp %9 : vector<128x128xi32> to vector<128x128xf32>
    %cst = arith.constant dense<0.000000e+00> : vector<8x128xf32>
    %11 = tpu.matmul %5, %10, %cst {dimension_numbers = #tpu.dot_dimension_numbers<[1], [0], [0], [1], [0, 0, 1, 1], [], []>} : vector<8x128xf32>, vector<128x128xf32>, vector<8x128xf32> -> vector<8x128xf32>
    %12 = tpu.iota {dimensions = array<i32: 0>} : vector<8x8xi32>
    %13 = tpu.iota {dimensions = array<i32: 1>} : vector<8x8xi32>
    %14 = arith.cmpi sgt, %12, %13 : vector<8x8xi32>
    %15 = arith.extui %14 : vector<8x8xi1> to vector<8x8xi32>
    %16 = arith.sitofp %15 : vector<8x8xi32> to vector<8x8xf32>
    %cst_4 = arith.constant dense<0.000000e+00> : vector<8x128xf32>
    %17 = tpu.matmul %16, %5, %cst_4 {dimension_numbers = #tpu.dot_dimension_numbers<[1], [0], [0], [1], [0, 0, 1, 1], [], []>} : vector<8x8xf32>, vector<8x128xf32>, vector<8x128xf32> -> vector<8x128xf32>
    %cst_5 = arith.constant dense<0.000000e+00> : vector<8xf32>
    %18 = vector.multi_reduction <add>, %17, %cst_5 [1] : vector<8x128xf32> to vector<8xf32>
    %19 = vector.shape_cast %18 : vector<8xf32> to vector<8x1xf32>
    %20 = vector.broadcast %19 : vector<8x1xf32> to vector<8x128xf32>
    %21 = arith.addf %11, %20 : vector<8x128xf32>
    %c0_6 = arith.constant 0 : index
    %c0_7 = arith.constant 0 : index
    %22 = vector.load %arg4[%c0_6, %c0_7] : memref<1x1xf32, #tpu.memory_space<vmem>>, vector<1x1xf32>
    %23 = vector.broadcast %22 : vector<1x1xf32> to vector<8x128xf32>
    %24 = arith.addf %21, %23 : vector<8x128xf32>
    %cst_8 = arith.constant 1.000000e-07 : f32
    %25 = vector.broadcast %cst_8 : f32 to vector<8x128xf32>
    %26 = arith.addf %24, %25 : vector<8x128xf32>
    %27 = math.log %26 : vector<8x128xf32>
    %28 = arith.subf %3, %27 : vector<8x128xf32>
    %29 = arith.mulf %28, %4 : vector<8x128xf32>
    %c0_9 = arith.constant 0 : index
    %c0_10 = arith.constant 0 : index
    %30 = vector.load %arg5[%c0_9, %c0_10] : memref<1x1xf32, #tpu.memory_space<vmem>>, vector<1x1xf32>
    %cst_11 = arith.constant dense<0.000000e+00> : vector<8xf32>
    %31 = vector.multi_reduction <add>, %29, %cst_11 [1] : vector<8x128xf32> to vector<8xf32>
    %32 = vector.shape_cast %31 : vector<8xf32> to vector<8x1xf32>
    %cst_12 = arith.constant dense<0.000000e+00> : vector<1xf32>
    %33 = vector.multi_reduction <add>, %32, %cst_12 [0] : vector<8x1xf32> to vector<1xf32>
    %34 = vector.shape_cast %33 : vector<1xf32> to vector<1x1xf32>
    %35 = arith.addf %30, %34 : vector<1x1xf32>
    %c0_13 = arith.constant 0 : index
    %c0_14 = arith.constant 0 : index
    %36 = vector.load %arg5[%c0_13, %c0_14] : memref<1x1xf32, #tpu.memory_space<vmem>>, vector<1x1xf32>
    tpu.vector_store %arg5[%c0_13, %c0_14], %35 {strides = array<i32>} : memref<1x1xf32, #tpu.memory_space<vmem>>, vector<1x1xf32>,
    %c0_15 = arith.constant 0 : index
    %c0_16 = arith.constant 0 : index
    %37 = vector.load %arg6[%c0_15, %c0_16] : memref<1x1xf32, #tpu.memory_space<vmem>>, vector<1x1xf32>
    %cst_17 = arith.constant dense<0.000000e+00> : vector<8xf32>
    %38 = vector.multi_reduction <add>, %4, %cst_17 [1] : vector<8x128xf32> to vector<8xf32>
    %39 = vector.shape_cast %38 : vector<8xf32> to vector<8x1xf32>
    %cst_18 = arith.constant dense<0.000000e+00> : vector<1xf32>
    %40 = vector.multi_reduction <add>, %39, %cst_18 [0] : vector<8x1xf32> to vector<1xf32>
    %41 = vector.shape_cast %40 : vector<1xf32> to vector<1x1xf32>
    %42 = arith.addf %37, %41 : vector<1x1xf32>
    %c0_19 = arith.constant 0 : index
    %c0_20 = arith.constant 0 : index
    %43 = vector.load %arg6[%c0_19, %c0_20] : memref<1x1xf32, #tpu.memory_space<vmem>>, vector<1x1xf32>
    tpu.vector_store %arg6[%c0_19, %c0_20], %42 {strides = array<i32>} : memref<1x1xf32, #tpu.memory_space<vmem>>, vector<1x1xf32>,
    %cst_21 = arith.constant dense<0.000000e+00> : vector<8xf32>
    %44 = vector.multi_reduction <add>, %5, %cst_21 [1] : vector<8x128xf32> to vector<8xf32>
    %45 = vector.shape_cast %44 : vector<8xf32> to vector<8x1xf32>
    %c0_22 = arith.constant 0 : index
    %c0_23 = arith.constant 0 : index
    %46 = vector.load %arg4[%c0_22, %c0_23] : memref<1x1xf32, #tpu.memory_space<vmem>>, vector<1x1xf32>
    %cst_24 = arith.constant dense<0.000000e+00> : vector<1xf32>
    %47 = vector.multi_reduction <add>, %45, %cst_24 [0] : vector<8x1xf32> to vector<1xf32>
    %48 = vector.shape_cast %47 : vector<1xf32> to vector<1x1xf32>
    %49 = arith.addf %46, %48 : vector<1x1xf32>
    %c0_25 = arith.constant 0 : index
    %c0_26 = arith.constant 0 : index
    %50 = vector.load %arg4[%c0_25, %c0_26] : memref<1x1xf32, #tpu.memory_space<vmem>>, vector<1x1xf32>
    tpu.vector_store %arg4[%c0_25, %c0_26], %49 {strides = array<i32>} : memref<1x1xf32, #tpu.memory_space<vmem>>, vector<1x1xf32>,
    %c0_i32_27 = arith.constant 0 : i32
    %51 = arith.cmpi eq, %arg0, %c0_i32_27 : i32
    %52 = arith.extui %51 : i1 to i32
    %c0_i32_28 = arith.constant 0 : i32
    %53 = arith.cmpi ne, %52, %c0_i32_28 : i32
    scf.if %53 {
      %c0_29 = arith.constant 0 : index
      %c0_30 = arith.constant 0 : index
      %54 = vector.load %arg5[%c0_29, %c0_30] : memref<1x1xf32, #tpu.memory_space<vmem>>, vector<1x1xf32>
      %cst_31 = arith.constant 0.000000e+00 : f32
      %55 = vector.broadcast %cst_31 : f32 to vector<1x1xf32>
      %56 = arith.subf %55, %54 : vector<1x1xf32>
      %c0_32 = arith.constant 0 : index
      %c0_33 = arith.constant 0 : index
      %57 = vector.load %arg6[%c0_32, %c0_33] : memref<1x1xf32, #tpu.memory_space<vmem>>, vector<1x1xf32>
      %cst_34 = arith.constant 1.000000e-07 : f32
      %58 = vector.broadcast %cst_34 : f32 to vector<1x1xf32>
      %59 = arith.addf %57, %58 : vector<1x1xf32>
      %60 = arith.divf %56, %59 : vector<1x1xf32>
      %c0_35 = arith.constant 0 : index
      %c0_36 = arith.constant 0 : index
      %61 = vector.load %arg3[%c0_35, %c0_36] : memref<1x1xf32, #tpu.memory_space<vmem>>, vector<1x1xf32>
      tpu.vector_store %arg3[%c0_35, %c0_36], %60 {strides = array<i32>} : memref<1x1xf32, #tpu.memory_space<vmem>>, vector<1x1xf32>,
    } else {
    }
    return
  }
  func.func @transform_0(%arg0: i32) -> (i32, i32) {
    %c0_i32 = arith.constant 0 : i32
    %c0_i32_0 = arith.constant 0 : i32
    return %arg0, %c0_i32 : i32, i32
  }
  func.func @transform_1(%arg0: i32) -> (i32, i32) {
    %c0_i32 = arith.constant 0 : i32
    %c0_i32_0 = arith.constant 0 : i32
    return %arg0, %c0_i32 : i32, i32
  }
  func.func @transform_2(%arg0: i32) -> (i32, i32) {
    %c0_i32 = arith.constant 0 : i32
    %c0_i32_0 = arith.constant 0 : i32
    %c0_i32_1 = arith.constant 0 : i32
    return %c0_i32, %c0_i32_0 : i32, i32
  }
}

</mosaic_0001>

<llo_original>
// kernel: tpu_custom_call.1
$region0: #{tpu_custom_call.1}
  #allocation0 [shape = 'u32[]', space=smem, size = 0x4, offset = 0x4, fixed_abs, tag = 'smem constant byte address 0x4 - core index']
  #allocation1 [shape = 'u32[72,128]{1,0:T(1,128)}', space=vmem, size = 0x9000, scoped, tag = 'internal scratch']
  #allocation2 [shape = 'f32[1,1]{1,0:T(1,128)}', space=vmem, size = 0x200, scoped, tag = 'scratch operand']
  #allocation3 [shape = 'f32[1,1]{1,0:T(1,128)}', space=vmem, size = 0x200, scoped, tag = 'scratch operand']
  #allocation4 [shape = 'f32[1,1]{1,0:T(1,128)}', space=vmem, size = 0x200, scoped, tag = 'scratch operand']
  %s0 = inlined_call_operand.hbm [shape: f32[8,128], index: 0, kind: input, shape index: {}]
  %s1 = inlined_call_operand.hbm [shape: f32[8,128], index: 1, kind: input, shape index: {}]
  %s2 = inlined_call_operand.hbm [shape: f32[1,1], index: 2, kind: output, shape index: {}]
  %s3 = sld [smem:[#allocation0]]
  $region34: #{tpu_custom_call.1} parent=0
    _
  %s5 = ssub.s32 1, %s3
  %s6 = scalar_select 0, %s5, %s3
  $region1: #{tpu_custom_call.1} parent=0
    #allocation5 [shape = 'u8[4096]{0}', space=vmem, size = 0x1000, scoped, tag = 'input window, operand 0, single buffered']
    #allocation6 [shape = 's32[1]{0}', space=sflag, size = 0x4, scoped, tag = 'scoped memory for tpu_custom_call.1']
    #allocation7 [shape = 's32[1]{0}', space=sflag, size = 0x4, scoped, tag = 'scoped memory for tpu_custom_call.1']
    #allocation8 [shape = 'u8[4096]{0}', space=vmem, size = 0x1000, scoped, tag = 'input window, operand 1, single buffered']
    #allocation9 [shape = 's32[1]{0}', space=sflag, size = 0x4, scoped, tag = 'scoped memory for tpu_custom_call.1']
    #allocation10 [shape = 'u8[512]{0}', space=vmem, size = 0x400, scoped, tag = 'output window, operand 0, single buffered']
    %7 = vsyncpa [#allocation6], 0
    %8 = vsyncpa [#allocation9], 0
    %9 = vsyncpa [#allocation7], 0
    // Predicated region
    $region2: #{tpu_custom_call.1} parent=1 // pred_check
      _
    $region3: #{tpu_custom_call.1} parent=1 // pred_check_branch
      %11 = sbr.rel (0) target = $region5
    $region4: #{tpu_custom_call.1} parent=1 // pred_region
      %13 = vsyncadd [#allocation6], 0
      %s15 = sshll.u32 %s0, 4
      %s16 = int_to_ptr.hbm [resolvable:$true] %s15
      %s17 = sshll.u32 [#allocation5], 4
      %s18 = int_to_ptr.vmem [resolvable:$true] %s17
      %20 = dma.hbm_to_vmem [thread:$0]  %s16, 128, %s18, [#allocation6]
    $region5: #{tpu_custom_call.1} parent=1 // pred_fallthru
      _
    // Predicated region
    $region6: #{tpu_custom_call.1} parent=1 // pred_check
      _
    $region7: #{tpu_custom_call.1} parent=1 // pred_check_branch
      %22 = sbr.rel (0) target = $region9
    $region8: #{tpu_custom_call.1} parent=1 // pred_region
      %24 = vsyncadd [#allocation9], 0
      %s26 = sshll.u32 %s1, 4
      %s27 = int_to_ptr.hbm [resolvable:$true] %s26
      %s28 = sshll.u32 [#allocation8], 4
      %s29 = int_to_ptr.vmem [resolvable:$true] %s28
      %31 = dma.hbm_to_vmem [thread:$0]  %s27, 128, %s29, [#allocation9]
    $region9: #{tpu_custom_call.1} parent=1 // pred_fallthru
      _
    // Predicated region
    $region10: #{tpu_custom_call.1} parent=1 // pred_check
      _
    $region11: #{tpu_custom_call.1} parent=1 // pred_check_branch
      %33 = sbr.rel (0) target = $region13
    $region12: #{tpu_custom_call.1} parent=1 // pred_region
      %35 = dma.done [#allocation6], 128
    $region13: #{tpu_custom_call.1} parent=1 // pred_fallthru
      _
    // Predicated region
    $region14: #{tpu_custom_call.1} parent=1 // pred_check
      _
    $region15: #{tpu_custom_call.1} parent=1 // pred_check_branch
      %37 = sbr.rel (0) target = $region17
    $region16: #{tpu_custom_call.1} parent=1 // pred_region
      %39 = dma.done [#allocation9], 128
    $region17: #{tpu_custom_call.1} parent=1 // pred_fallthru
      _
    %p40 = scmp.eq.s32.totalorder 0, 0
    // Predicated region
    $region18: #{tpu_custom_call.1} parent=1 // pred_check
      %p41 = pneg %p40
    $region19: #{tpu_custom_call.1} parent=1 // pred_check_branch
      %43 = sbr.rel (%p41) target = $region21
    $region20: #{tpu_custom_call.1} parent=1 // pred_region
      %vm44 = vcmask 0
      %45 = vst.msk [vmem:[#allocation2] sm:$0x1] %vm44, 0.0
      %46 = vst.msk [vmem:[#allocation3] sm:$0x1] %vm44, 0.0
      %47 = vst.msk [vmem:[#allocation4] sm:$0x1] %vm44, 0.0
    $region21: #{tpu_custom_call.1} parent=1 // pred_fallthru
      _
    %v48 = vld [vmem:[#allocation5] sm:$0xff]
    %v49 = vld [vmem:[#allocation8] sm:$0xff]
    %v50 = vmul.f32 %v48, 1.442695
    %v51 = vpow.pop %v50
    %v52 = vlaneseq
    %v53 = vshrl.u32 %v52, 7
    %v54 = vadd.s32 %v53, 8
    %v55 = vadd.s32 %v53, 16
    %v56 = vadd.s32 %v53, 24
    %v57 = vadd.s32 %v53, 32
    %v58 = vadd.s32 %v53, 40
    %v59 = vadd.s32 %v53, 48
    %v60 = vadd.s32 %v53, 56
    %v61 = vadd.s32 %v53, 64
    %v62 = vadd.s32 %v53, 72
    %v63 = vadd.s32 %v53, 80
    %v64 = vadd.s32 %v53, 88
    %v65 = vadd.s32 %v53, 96
    %v66 = vadd.s32 %v53, 104
    %v67 = vadd.s32 %v53, 112
    %v68 = vadd.s32 %v53, 120
    %v69 = vlaneseq
    %v70 = vand.u32 %v69, 127
    %vm71 = vcmp.le.s32.totalorder %v53, %v70
    %vm72 = vcmp.le.s32.totalorder %v54, %v70
    %vm73 = vcmp.le.s32.totalorder %v55, %v70
    %vm74 = vcmp.le.s32.totalorder %v56, %v70
    %vm75 = vcmp.le.s32.totalorder %v57, %v70
    %vm76 = vcmp.le.s32.totalorder %v58, %v70
    %vm77 = vcmp.le.s32.totalorder %v59, %v70
    %vm78 = vcmp.le.s32.totalorder %v60, %v70
    %vm79 = vcmp.le.s32.totalorder %v61, %v70
    %vm80 = vcmp.le.s32.totalorder %v62, %v70
    %vm81 = vcmp.le.s32.totalorder %v63, %v70
    %vm82 = vcmp.le.s32.totalorder %v64, %v70
    %vm83 = vcmp.le.s32.totalorder %v65, %v70
    %vm84 = vcmp.le.s32.totalorder %v66, %v70
    %vm85 = vcmp.le.s32.totalorder %v67, %v70
    %vm86 = vcmp.le.s32.totalorder %v68, %v70
    %v87 = vsel %vm71, 1, 0
    %v88 = vsel %vm72, 1, 0
    %v89 = vsel %vm73, 1, 0
    %v90 = vsel %vm74, 1, 0
    %v91 = vsel %vm75, 1, 0
    %v92 = vsel %vm76, 1, 0
    %v93 = vsel %vm77, 1, 0
    %v94 = vsel %vm78, 1, 0
    %v95 = vsel %vm79, 1, 0
    %v96 = vsel %vm80, 1, 0
    %v97 = vsel %vm81, 1, 0
    %v98 = vsel %vm82, 1, 0
    %v99 = vsel %vm83, 1, 0
    %v100 = vsel %vm84, 1, 0
    %v101 = vsel %vm85, 1, 0
    %v102 = vsel %vm86, 1, 0
    %v103 = vcvt.s32.f32 %v87
    %v104 = vcvt.s32.f32 %v88
    %v105 = vcvt.s32.f32 %v89
    %v106 = vcvt.s32.f32 %v90
    %v107 = vcvt.s32.f32 %v91
    %v108 = vcvt.s32.f32 %v92
    %v109 = vcvt.s32.f32 %v93
    %v110 = vcvt.s32.f32 %v94
    %v111 = vcvt.s32.f32 %v95
    %v112 = vcvt.s32.f32 %v96
    %v113 = vcvt.s32.f32 %v97
    %v114 = vcvt.s32.f32 %v98
    %v115 = vcvt.s32.f32 %v99
    %v116 = vcvt.s32.f32 %v100
    %v117 = vcvt.s32.f32 %v101
    %v118 = vcvt.s32.f32 %v102
    %vm119 = vcmp.gt.s32.totalorder %v53, %v70
    %v120 = vsel %vm119, 1, 0
    %v121 = vcvt.s32.f32 %v120
    %vm122 = vcmask 64512
    %v124 = vsel %vm122, %v121, 0
    %126 = vmatpush.msra.mxu0 0.0
    %127 = vmatpush.msra.mxu0 0.0
    %128 = vmatpush.msra.mxu0 0.0
    %129 = vmatpush.msra.mxu0 0.0
    %130 = vmatpush.msra.mxu0 0.0
    %131 = vmatpush.msra.mxu0 0.0
    %132 = vmatpush.msra.mxu0 0.0
    %133 = vmatpush.msra.mxu0 0.0
    %134 = vmatpush.msra.mxu0 0.0
    %135 = vmatpush.msra.mxu0 0.0
    %136 = vmatpush.msra.mxu0 0.0
    %137 = vmatpush.msra.mxu0 0.0
    %138 = vmatpush.msra.mxu0 0.0
    %139 = vmatpush.msra.mxu0 0.0
    %140 = vmatpush.msra.mxu0 0.0
    %141 = vmatpush.msra.mxu0 %v51
    %142 = vmatmul.f32.gmra.mxu0 %v124
    %v143 = vpop.f32.mrf.mxu0
    %v144 = vadd.f32 0.0, %v143
    %145 = vdwg.mxu0
    %146 = vadd.xlane.f32.xlu0 %v144
    %v147 = vpop.xlane.xlu0 %146
    %148 = vmatpush.msra.mxu0 %v118
    %149 = vmatpush.msra.mxu0 %v117
    %150 = vmatpush.msra.mxu0 %v116
    %151 = vmatpush.msra.mxu0 %v115
    %152 = vmatpush.msra.mxu0 %v114
    %153 = vmatpush.msra.mxu0 %v113
    %154 = vmatpush.msra.mxu0 %v112
    %155 = vmatpush.msra.mxu0 %v111
    %156 = vmatpush.msra.mxu0 %v110
    %157 = vmatpush.msra.mxu0 %v109
    %158 = vmatpush.msra.mxu0 %v108
    %159 = vmatpush.msra.mxu0 %v107
    %160 = vmatpush.msra.mxu0 %v106
    %161 = vmatpush.msra.mxu0 %v105
    %162 = vmatpush.msra.mxu0 %v104
    %163 = vmatpush.msra.mxu0 %v103
    %164 = vmatmul.f32.gmra.mxu0 %v51
    %v165 = vpop.f32.mrf.mxu0
    %v166 = vadd.f32 %v147, %v165
    %167 = vdwg.mxu0
    %v168 = vld [vmem:[#allocation2] sm:$0x1]
    %v170 = vperm.slane %v168, 0
    %171 = vset.pattern.permute.xlu0 0
    %172 = vperm.xlu0 %171, %v170
    %v173 = vpop.permute.xlu0 %172
    %v175 = vadd.f32 %v166, %v173
    %v176 = vadd.f32 %v175, 1e-07
    %v177 = vlog2.pop %v176
    %v178 = vmul.f32 %v177, 0.6931472
    %v179 = vsub.f32 %v48, %v178
    %v180 = vmul.f32 %v179, %v49
    %v181 = vld [vmem:[#allocation3] sm:$0x1]
    %182 = vadd.xlane.f32.xlu0 %v180
    %v183 = vpop.xlane.xlu0 %182
    %v184 = vrot.slane %v183, 4
    %v185 = vadd.f32 %v183, %v184
    %v186 = vrot.slane %v185, 2
    %v187 = vadd.f32 %v185, %v186
    %v188 = vrot.slane %v187, 1
    %v189 = vadd.f32 %v187, %v188
    %v190 = vadd.f32 %v181, %v189
    %vm191 = vcmask 0
    %192 = vst.msk [vmem:[#allocation3] sm:$0x1] %vm191, %v190
    %v193 = vld [vmem:[#allocation4] sm:$0x1]
    %194 = vadd.xlane.f32.xlu0 %v49
    %v195 = vpop.xlane.xlu0 %194
    %v196 = vrot.slane %v195, 4
    %v197 = vadd.f32 %v195, %v196
    %v198 = vrot.slane %v197, 2
    %v199 = vadd.f32 %v197, %v198
    %v200 = vrot.slane %v199, 1
    %v201 = vadd.f32 %v199, %v200
    %v202 = vadd.f32 %v193, %v201
    %203 = vst.msk [vmem:[#allocation4] sm:$0x1] %vm191, %v202
    %204 = vadd.xlane.f32.xlu0 %v51
    %v205 = vpop.xlane.xlu0 %204
    %v206 = vld [vmem:[#allocation2] sm:$0x1]
    %v207 = vrot.slane %v205, 4
    %v208 = vadd.f32 %v205, %v207
    %v209 = vrot.slane %v208, 2
    %v210 = vadd.f32 %v208, %v209
    %v211 = vrot.slane %v210, 1
    %v212 = vadd.f32 %v210, %v211
    %v213 = vadd.f32 %v206, %v212
    %214 = vst.msk [vmem:[#allocation2] sm:$0x1] %vm191, %v213
    // Predicated region
    $region22: #{tpu_custom_call.1} parent=1 // pred_check
      %p215 = pneg %p40
    $region23: #{tpu_custom_call.1} parent=1 // pred_check_branch
      %217 = sbr.rel (%p215) target = $region25
    $region24: #{tpu_custom_call.1} parent=1 // pred_region
      %v218 = vld [vmem:[#allocation3] sm:$0x1]
      %v219 = vsub.f32 0.0, %v218
      %v220 = vld [vmem:[#allocation4] sm:$0x1]
      %v221 = vadd.f32 %v220, 1e-07
      %v222 = vrcp.pop %v221
      %v223 = vmul.f32 %v221, %v222
      %v224 = vsub.f32 1.0, %v223
      %v225 = vmul.f32 %v222, %v224
      %v226 = vadd.f32 %v222, %v225
      %vm227 = vweird.f32 %v221
      %vm228 = vweird.f32 %v222
      %vm229 = vmor %vm227, %vm228
      %v230 = vsel %vm229, %v222, %v226
      %v231 = vand.u32 2147483647, %v221
      %vm232 = vcmp.eq.f32.partialorder %v231, 8.507059e+37
      %v233 = vand.u32 %v221, 2147483648
      %v234 = vor.u32 1.1754944e-38, %v233
      %v235 = vsel %vm232, %v234, %v230
      %v236 = vmul.f32 %v219, %v235
      %237 = vst.msk [vmem:[#allocation10] sm:$0x1] %vm191, %v236
    $region25: #{tpu_custom_call.1} parent=1 // pred_fallthru
      _
    // Predicated region
    $region26: #{tpu_custom_call.1} parent=1 // pred_check
      _
    $region27: #{tpu_custom_call.1} parent=1 // pred_check_branch
      %239 = sbr.rel (0) target = $region29
    $region28: #{tpu_custom_call.1} parent=1 // pred_region
      %241 = vsyncadd [#allocation7], 0
      %s243 = sshll.u32 [#allocation10], 4
      %s244 = int_to_ptr.vmem [resolvable:$true] %s243
      %s245 = sshll.u32 %s2, 4
      %s246 = int_to_ptr.hbm [resolvable:$true] %s245
      %248 = dma.vmem_to_hbm [thread:$0]  %s244, 16, %s246, [#allocation7]
    $region29: #{tpu_custom_call.1} parent=1 // pred_fallthru
      _
    // Predicated region
    $region30: #{tpu_custom_call.1} parent=1 // pred_check
      _
    $region31: #{tpu_custom_call.1} parent=1 // pred_check_branch
      %250 = sbr.rel (0) target = $region33
    $region32: #{tpu_custom_call.1} parent=1 // pred_region
      %252 = dma.done [#allocation7], 16
    $region33: #{tpu_custom_call.1} parent=1 // pred_fallthru
      _
    %253 = vsyncpa [#allocation6], 1
    %254 = vsyncpa [#allocation9], 1
    %255 = vsyncpa [#allocation7], 1

</llo_original>
